<compile_context>
chip_gen: v5e
topology: v5e:2x2
jax: 0.10.0
libtpu: 0.0.40
codegen_flags: <defaults>
</compile_context>

<pallas_src>
import jax
import jax.numpy as jnp
from jax import lax
from jax.experimental import pallas as pl
from jax.experimental.pallas import tpu as pltpu


# ------------------------- Pallas kernels ------------------------- #
def transform_kernel(x_ref, w_ref, out_ref):
    # h0 = x @ W  (bf16 MXU operands, f32 accumulation)
    out_ref[...] = jnp.dot(
        x_ref[...], w_ref[...], preferred_element_type=jnp.float32
    ).astype(out_ref.dtype)


def propagate_kernel(a_ref, h_ref, wn_ref, out_ref, acc_ref):
    # One GCN propagation step + RiemannAgg, tiled over (row tile i, contraction tile k).
    k = pl.program_id(1)

    @pl.when(k == 0)
    def _():
        acc_ref[...] = jnp.zeros_like(acc_ref)

    # scatter_add(norm * x[row], col)  ==  A @ h   with A[col, row] = norm
    acc_ref[...] += jnp.dot(
        a_ref[...], h_ref[...].astype(jnp.bfloat16),
        preferred_element_type=jnp.float32,
    )

    @pl.when(k == pl.num_programs(1) - 1)
    def _():
        conv = acc_ref[...]                # (TM, C_pad) f32
        wn = jnp.abs(wn_ref[...])          # (1, C_pad)  f32 — w_for_norm.abs()
        # RiemannAgg: x / sqrt(sum(x^2 * w, axis=1) + 1e-6)  ->  rsqrt (EUP) + multiply
        inv = lax.rsqrt(jnp.sum(conv * conv * wn, axis=1, keepdims=True) + 1e-6)
        out_ref[...] = (conv * inv).astype(out_ref.dtype)
        # TODO(synk): layers_bn[i] is identity for type_norm='None'; other norm types
        # (batch/group norm) are not implemented here.


# ------------------------- wrapper ------------------------- #
def simple_gcn_forward(x, weight, adj, w_for_norm, *, num_layers, tm=256, tk=256):
    N, F = x.shape
    C = weight.shape[1]
    c_pad = max(128, ((C + 127) // 128) * 128)   # lane-dense class dim

    tm = min(tm, N)
    tk = min(tk, N)
    assert N % tm == 0 and N % tk == 0, "N must be divisible by the tile sizes"

    # padded / cast operands
    w_pad = jnp.pad(weight.astype(jnp.float32), ((0, 0), (0, c_pad - C)))
    wn_pad = jnp.pad(w_for_norm.astype(jnp.float32), ((0, 0), (0, c_pad - C)))
    x_bf16 = x.astype(jnp.bfloat16)
    w_bf16 = w_pad.astype(jnp.bfloat16)
    adj_bf16 = adj.astype(jnp.bfloat16)

    # 1) feature transform h0 = x @ W (row-tiled, one block per grid step)
    h = pl.pallas_call(
        transform_kernel,
        out_shape=jax.ShapeDtypeStruct((N, c_pad), jnp.float32),
        grid=(N // tm,),
        in_specs=[
            pl.BlockSpec((tm, F), lambda i: (i, 0)),
            pl.BlockSpec((F, c_pad), lambda i: (0, 0)),
        ],
        out_specs=pl.BlockSpec((tm, c_pad), lambda i: (i, 0)),
        compiler_params=pltpu.CompilerParams(dimension_semantics=("parallel",)),
    )(x_bf16, w_bf16)

    # 2) num_layers x (A @ h + RiemannAgg), rows parallel / contraction arbitrary,
    #    f32 accumulator scratch across the K reduction.
    prop = pl.pallas_call(
        propagate_kernel,
        out_shape=jax.ShapeDtypeStruct((N, c_pad), jnp.float32),
        grid=(N // tm, N // tk),
        in_specs=[
            pl.BlockSpec((tm, tk), lambda i, k: (i, k)),      # A tile (bf16)
            pl.BlockSpec((tk, c_pad), lambda i, k: (k, 0)),   # h tile (f32)
            pl.BlockSpec((1, c_pad), lambda i, k: (0, 0)),    # w_for_norm
        ],
        out_specs=pl.BlockSpec((tm, c_pad), lambda i, k: (i, 0)),
        scratch_shapes=[pltpu.VMEM((tm, c_pad), jnp.float32)],
        compiler_params=pltpu.CompilerParams(
            dimension_semantics=("parallel", "arbitrary")
        ),
    )
    for _ in range(num_layers):
        h = prop(adj_bf16, h, wn_pad)

    return h[:, :C]


# ------------------------- glue (plain JAX) ------------------------- #
def build_norm_adjacency(edge_index, num_nodes, dtype=jnp.float32):
    """Dense equivalent of simpleGCN.norm + the scatter-add message passing."""
    row, col = edge_index[0], edge_index[1]
    edge_weight = jnp.ones((edge_index.shape[1],), dtype=dtype)
    deg = jnp.zeros((num_nodes,), dtype=dtype).at[row].add(edge_weight)
    deg_inv_sqrt = deg ** -0.5
    deg_inv_sqrt = jnp.where(jnp.isinf(deg_inv_sqrt), 0.0, deg_inv_sqrt)
    norm = deg_inv_sqrt[row] * edge_weight * deg_inv_sqrt[col]  # (E,)
    # out[col] += norm * x[row]  <=>  (A @ x) with A[col, row] += norm
    adj = jnp.zeros((num_nodes, num_nodes), dtype=dtype).at[col, row].add(norm)
    return adj


def glorot_uniform(key, shape, dtype=jnp.float32):
    fan_in, fan_out = shape
    limit = jnp.sqrt(6.0 / (fan_in + fan_out))
    return jax.random.uniform(key, shape, dtype, minval=-limit, maxval=limit)


def reference_forward_f32(x, weight, adj, w_for_norm, num_layers):
    """Exact f32 spec of the PyTorch module (sqrt + divide, dense adjacency)."""
    h = x @ weight
    wn = jnp.abs(w_for_norm)
    for _ in range(num_layers):
        conv = adj @ h
        denom = jnp.sqrt(jnp.sum(conv * conv * wn, axis=1, keepdims=True) + 1e-6)
        h = conv / denom
    return h


def reference_forward_matched(x, weight, adj, w_for_norm, num_layers):
    """Same math with the kernel's precision choices (bf16 MXU operands, f32 accum)."""
    h = jnp.dot(x.astype(jnp.bfloat16), weight.astype(jnp.bfloat16),
                preferred_element_type=jnp.float32)
    wn = jnp.abs(w_for_norm)
    adj_bf16 = adj.astype(jnp.bfloat16)
    for _ in range(num_layers):
        conv = jnp.dot(adj_bf16, h.astype(jnp.bfloat16),
                       preferred_element_type=jnp.float32)
        inv = lax.rsqrt(jnp.sum(conv * conv * wn, axis=1, keepdims=True) + 1e-6)
        h = conv * inv
    return h


# ------------------------- main ------------------------- #
if __name__ == "__main__":
    # small config consistent with the module's __init__
    num_nodes = 512     # N (2x2 tile grid at TM=TK=256)
    num_feats = 64      # args.num_feats
    num_classes = 16    # args.num_classes
    num_layers = 2      # args.num_layers
    num_edges = 2048

    key = jax.random.PRNGKey(0)
    k_x, k_w, k_wn, k_row, k_col = jax.random.split(key, 5)

    # inputs
    x = jax.random.normal(k_x, (num_nodes, num_feats), dtype=jnp.float32)
    row = jax.random.randint(k_row, (num_edges,), 0, num_nodes, dtype=jnp.int32)
    col = jax.random.randint(k_col, (num_edges,), 0, num_nodes, dtype=jnp.int32)
    edge_index = jnp.stack([row, col], axis=0)  # (2, E)

    # parameters (deterministic init mirroring __init__)
    weight = glorot_uniform(k_w, (num_feats, num_classes))                 # glorot(self.weight)
    stdv = 1.0 / jnp.sqrt(float(num_classes))
    w_for_norm = jax.random.uniform(k_wn, (1, num_classes), jnp.float32,
                                    minval=-stdv, maxval=stdv)             # self.w_for_norm

    # F.dropout in eval mode is identity (training=False), so no dropout applied.
    adj = build_norm_adjacency(edge_index, num_nodes)

    out = simple_gcn_forward(x, weight, adj, w_for_norm, num_layers=num_layers)
    out = jax.block_until_ready(out)
    assert out.shape == (num_nodes, num_classes)

    # precision-matched reference (same bf16 operand casts): tight check of kernel math
    ref_matched = reference_forward_matched(x, weight, adj, w_for_norm, num_layers)
    assert bool(jnp.allclose(out, ref_matched, rtol=1e-2, atol=1e-2))

    # full-f32 spec of the module: loose sanity check (bf16 adjacency introduces ~1% error)
    ref_f32 = reference_forward_f32(x, weight, adj, w_for_norm, num_layers)
    assert bool(jnp.allclose(out, ref_f32, rtol=1e-1, atol=1e-1))

    print("KERNEL_OK")
</pallas_src>

<mosaic_0001>
module attributes {stable_mosaic.version = 11 : i64} {
  func.func @transform_kernel(%arg0: i32, %arg1: memref<256x64xbf16, #tpu.memory_space<vmem>>, %arg2: memref<64x128xbf16, #tpu.memory_space<vmem>>, %arg3: memref<256x128xf32, #tpu.memory_space<vmem>>) attributes {dimension_semantics = [#tpu.dimension_semantics<parallel>], iteration_bounds = array<i64: 2>, scalar_prefetch = 0 : i64, scratch_operands = 0 : i64, tpu.core_type = #tpu.core_type<tc>, window_params = [{transform_indices = @transform_0, window_bounds = array<i64: 256, 64>}, {pipeline_mode = #tpu.pipeline_mode<synchronous>, transform_indices = @transform_1, window_bounds = array<i64: 64, 128>}, {transform_indices = @transform_2, window_bounds = array<i64: 256, 128>}]} {
    %c0 = arith.constant 0 : index
    %c0_0 = arith.constant 0 : index
    %0 = vector.load %arg1[%c0, %c0_0] : memref<256x64xbf16, #tpu.memory_space<vmem>>, vector<256x64xbf16>
    %c0_1 = arith.constant 0 : index
    %c0_2 = arith.constant 0 : index
    %1 = vector.load %arg2[%c0_1, %c0_2] : memref<64x128xbf16, #tpu.memory_space<vmem>>, vector<64x128xbf16>
    %cst = arith.constant dense<0.000000e+00> : vector<256x128xf32>
    %2 = tpu.matmul %0, %1, %cst {dimension_numbers = #tpu.dot_dimension_numbers<[1], [0], [0], [1], [0, 0, 1, 1], [], []>} : vector<256x64xbf16>, vector<64x128xbf16>, vector<256x128xf32> -> vector<256x128xf32>
    %c0_3 = arith.constant 0 : index
    %c0_4 = arith.constant 0 : index
    %3 = vector.load %arg3[%c0_3, %c0_4] : memref<256x128xf32, #tpu.memory_space<vmem>>, vector<256x128xf32>
    tpu.vector_store %arg3[%c0_3, %c0_4], %2 {strides = array<i32>} : memref<256x128xf32, #tpu.memory_space<vmem>>, vector<256x128xf32>,
    return
  }
  func.func @transform_0(%arg0: i32) -> (i32, i32) {
    %c0_i32 = arith.constant 0 : i32
    %c0_i32_0 = arith.constant 0 : i32
    return %arg0, %c0_i32 : i32, i32
  }
  func.func @transform_1(%arg0: i32) -> (i32, i32) {
    %c0_i32 = arith.constant 0 : i32
    %c0_i32_0 = arith.constant 0 : i32
    %c0_i32_1 = arith.constant 0 : i32
    return %c0_i32, %c0_i32_0 : i32, i32
  }
  func.func @transform_2(%arg0: i32) -> (i32, i32) {
    %c0_i32 = arith.constant 0 : i32
    %c0_i32_0 = arith.constant 0 : i32
    return %arg0, %c0_i32 : i32, i32
  }
}

</mosaic_0001>

<llo_original>
// kernel: tpu_custom_call.1
$region0: #{tpu_custom_call.1}
  #allocation0 [shape = 'u32[]', space=smem, size = 0x4, offset = 0x4, fixed_abs, tag = 'smem constant byte address 0x4 - core index']
  #allocation1 [shape = 'u32[72,128]{1,0:T(1,128)}', space=vmem, size = 0x9000, scoped, tag = 'internal scratch']
  %s0 = inlined_call_operand.vmem [shape: bf16[512,64], index: 0, kind: input, shape index: {}]
  %s1 = inlined_call_operand.vmem [shape: bf16[64,128], index: 1, kind: input, shape index: {}]
  %s2 = inlined_call_operand.hbm [shape: f32[512,128], index: 2, kind: output, shape index: {}]
  %s3 = sld [smem:[#allocation0]]
  $region41: #{tpu_custom_call.1} parent=0
    _
  %s5 = ssub.s32 1, %s3
  %s6 = scalar_select 0, %s5, %s3
  $region1: #{tpu_custom_call.1} parent=0
    #allocation2 [shape = 'u8[262144]{0}', space=vmem, size = 0x40000, scoped, tag = 'output window, operand 0']
    #allocation3 [shape = 's32[2]{0}', space=sflag, size = 0x8, scoped, tag = 'scoped memory for tpu_custom_call.1']
    %7 = vsyncpa [#allocation3], 0
    %s8 = scalar_lea.sflag [#allocation3], 1
    %9 = vsyncpa %s8, 0
    loop: start=0, step=1, limit=4
    $region2: #{tpu_custom_call.1} parent=1 // loop_pre_header
      _
    $region3: #{tpu_custom_call.1} parent=1 // loop_header
      %s11 = sphi 0, %s15
      %p12 = scmp.ge.s32.totalorder %s11, 4
      %s21 = sphi 0, %s23
      %s24 = sphi 0, %s21
      %s25 = sphi 0, %s24
      %s41 = sphi 0, %s25
      %s45 = sphi 0, %s45
      %s47 = sphi 0, %s45
      %s48 = sphi 0, %s47
      %s62 = sphi 0, %s48
      %s68 = sphi 0, %s70
      %s71 = sphi 0, %s68
      %s72 = sphi 0, %s71
      %s88 = sphi 0, %s72
    $region4: #{tpu_custom_call.1} parent=1 // loop_header_branch
      %14 = sbr.rel (%p12) target = $region8
    $region5: #{tpu_custom_call.1} parent=1 // loop_body
      %s16 = ssub.s32 %s11, 1
      %s17 = ssub.s32 %s11, 2
      %s18 = sadd.s32 %s11, 1
      %s19 = ssub.s32 %s11, %s18
      %p20 = scmp.eq.s32.totalorder %s19, 0
      %s22 = sadd.s32 %s21, 1
      %s23 = scalar_select %p20, %s21, %s22
      %p26 = pneg %p20
      %p27 = scmp.eq.s32.totalorder %s11, 1
      %p28 = por %p26, %p27
      %p29 = scmp.ne.s32.totalorder %s21, %s24
      %p30 = scmp.eq.s32.totalorder %s11, 0
      %p31 = por %p29, %p30
      %p32 = scmp.ne.s32.totalorder %s21, %s24
      %p33 = scmp.eq.s32.totalorder %s16, 1
      %p34 = por %p32, %p33
      %p35 = scmp.ne.s32.totalorder %s24, %s25
      %p36 = scmp.eq.s32.totalorder %s16, 0
      %p37 = por %p35, %p36
      %p38 = scmp.ne.s32.totalorder %s24, %s25
      %p39 = scmp.eq.s32.totalorder %s17, 1
      %p40 = por %p38, %p39
      %p42 = scmp.ne.s32.totalorder %s25, %s41
      %p43 = scmp.eq.s32.totalorder %s17, 0
      %p44 = por %p42, %p43
      %s46 = sadd.s32 %s45, 1
      %p49 = scmp.eq.s32.totalorder %s11, 1
      %p50 = scmp.ne.s32.totalorder %s45, %s47
      %p51 = scmp.eq.s32.totalorder %s11, 0
      %p52 = por %p50, %p51
      %p53 = scmp.ne.s32.totalorder %s45, %s47
      %p54 = scmp.eq.s32.totalorder %s16, 1
      %p55 = por %p53, %p54
      %p56 = scmp.ne.s32.totalorder %s47, %s48
      %p57 = scmp.eq.s32.totalorder %s16, 0
      %p58 = por %p56, %p57
      %p59 = scmp.ne.s32.totalorder %s47, %s48
      %p60 = scmp.eq.s32.totalorder %s17, 1
      %p61 = por %p59, %p60
      %p63 = scmp.ne.s32.totalorder %s48, %s62
      %p64 = scmp.eq.s32.totalorder %s17, 0
      %p65 = por %p63, %p64
      %s66 = ssub.s32 %s11, %s18
      %p67 = scmp.eq.s32.totalorder %s66, 0
      %s69 = sadd.s32 %s68, 1
      %s70 = scalar_select %p67, %s68, %s69
      %p73 = pneg %p67
      %p74 = scmp.eq.s32.totalorder %s11, 1
      %p75 = por %p73, %p74
      %p76 = scmp.ne.s32.totalorder %s68, %s71
      %p77 = scmp.eq.s32.totalorder %s11, 0
      %p78 = por %p76, %p77
      %p79 = scmp.ne.s32.totalorder %s68, %s71
      %p80 = scmp.eq.s32.totalorder %s16, 1
      %p81 = por %p79, %p80
      %p82 = scmp.ne.s32.totalorder %s71, %s72
      %p83 = scmp.eq.s32.totalorder %s16, 0
      %p84 = por %p82, %p83
      %p85 = scmp.ne.s32.totalorder %s71, %s72
      %p86 = scmp.eq.s32.totalorder %s17, 1
      %p87 = por %p85, %p86
      %p89 = scmp.ne.s32.totalorder %s72, %s88
      %p90 = scmp.eq.s32.totalorder %s17, 0
      %p91 = por %p89, %p90
      %p92 = scmp.le.s32.totalorder 1, %s11
      %p93 = scmp.lt.s32.totalorder %s11, 3
      %p94 = pnand %p92, %p93
      %p95 = pneg %p94
      // Predicated region
      $region9: #{tpu_custom_call.1} parent=5 // pred_check
        _
      $region10: #{tpu_custom_call.1} parent=5 // pred_check_branch
        %97 = sbr.rel (%p94) target = $region12
      $region11: #{tpu_custom_call.1} parent=5 // pred_region
        %s98 = ssub.s32 %s11, 1
        // Predicated region
        $region13: #{tpu_custom_call.1} parent=11 // pred_check
          %p99 = pneg %p58
        $region14: #{tpu_custom_call.1} parent=11 // pred_check_branch
          %101 = sbr.rel (%p99) target = $region16
        $region15: #{tpu_custom_call.1} parent=11 // pred_region
          _
        $region16: #{tpu_custom_call.1} parent=11 // pred_fallthru
          _
      $region12: #{tpu_custom_call.1} parent=5 // pred_fallthru
        _
      %p102 = scmp.lt.s32.totalorder %s11, 2
      // Predicated region
      $region17: #{tpu_custom_call.1} parent=5 // pred_check
        %p103 = pneg %p102
      $region18: #{tpu_custom_call.1} parent=5 // pred_check_branch
        %105 = sbr.rel (%p103) target = $region20
      $region19: #{tpu_custom_call.1} parent=5 // pred_region
        // Predicated region
        $region21: #{tpu_custom_call.1} parent=19 // pred_check
          %p106 = pneg %p31
        $region22: #{tpu_custom_call.1} parent=19 // pred_check_branch
          %108 = sbr.rel (%p106) target = $region24
        $region23: #{tpu_custom_call.1} parent=19 // pred_region
          %s109 = smul.u32 32, %s11
          %p110 = scmp.lt.s32.totalorder %s109, 63
          %s111 = scalar_select %p110, %s109, 63
          %s112 = smul.addr %s111, 4
          %s113 = scalar_lea.vmem %s0, %s112
          %s114 = smul.u32 32, %s11
        $region24: #{tpu_custom_call.1} parent=19 // pred_fallthru
          _
      $region20: #{tpu_custom_call.1} parent=5 // pred_fallthru
        _
      %p115 = scmp.le.s32.totalorder 1, %s11
      %p116 = scmp.lt.s32.totalorder %s11, 3
      %p117 = pnand %p115, %p116
      %p118 = pneg %p117
      // Predicated region
      $region25: #{tpu_custom_call.1} parent=5 // pred_check
        _
      $region26: #{tpu_custom_call.1} parent=5 // pred_check_branch
        %120 = sbr.rel (%p117) target = $region28
      $region27: #{tpu_custom_call.1} parent=5 // pred_region
        %s121 = ssub.s32 %s11, 1
        %s122 = smul.u32 32, %s16
        %p123 = scmp.lt.s32.totalorder %s122, 63
        %s124 = scalar_select %p123, %s122, 63
        %s125 = smul.addr %s124, 4
        %s126 = scalar_lea.vmem %s0, %s125
        %p127 = pneg %p37
        %p128 = pneg %p34
        %p129 = pneg %p58
        %p130 = pneg %p55
        %p131 = pneg %p84
        %p132 = pneg %p81
        %s133 = sand.u32 %s71, 1
        %s134 = scalar_lea.sflag [#allocation3], %s133
        %s135 = sand.u32 %s71, 1
        %s136 = smul.addr %s135, 256
        %s137 = scalar_lea.vmem [#allocation2], %s136
        %s138 = smul.u32 32, %s16
        %p139 = scmp.lt.s32.totalorder %s138, 63
        %s140 = scalar_select %p139, %s138, 63
        %s141 = smul.addr %s140, 4
        %s142 = scalar_lea.vmem %s0, %s141
        %s143 = smul.u32 32, %s16
        %s144 = smul.u32 32, %s16
        %v146 = vld [vmem:[%s142] sm:$0xf]
        %v147 = vld [vmem:[%s142 + $0x4] sm:$0xf]
        %v148 = vld [vmem:[%s142 + $0x8] sm:$0xf]
        %v149 = vld [vmem:[%s142 + $0xc] sm:$0xf]
        %v150 = vld [vmem:[%s142 + $0x10] sm:$0xf]
        %v151 = vld [vmem:[%s142 + $0x14] sm:$0xf]
        %v152 = vld [vmem:[%s142 + $0x18] sm:$0xf]
        %v153 = vld [vmem:[%s142 + $0x1c] sm:$0xf]
        %v154 = vld [vmem:[%s142 + $0x20] sm:$0xf]
        %v155 = vld [vmem:[%s142 + $0x24] sm:$0xf]
        %v156 = vld [vmem:[%s142 + $0x28] sm:$0xf]
        %v157 = vld [vmem:[%s142 + $0x2c] sm:$0xf]
        %v158 = vld [vmem:[%s142 + $0x30] sm:$0xf]
        %v159 = vld [vmem:[%s142 + $0x34] sm:$0xf]
        %v160 = vld [vmem:[%s142 + $0x38] sm:$0xf]
        %v161 = vld [vmem:[%s142 + $0x3c] sm:$0xf]
        %v162 = vld [vmem:[%s142 + $0x40] sm:$0xf]
        %v163 = vld [vmem:[%s142 + $0x44] sm:$0xf]
        %v164 = vld [vmem:[%s142 + $0x48] sm:$0xf]
        %v165 = vld [vmem:[%s142 + $0x4c] sm:$0xf]
        %v166 = vld [vmem:[%s142 + $0x50] sm:$0xf]
        %v167 = vld [vmem:[%s142 + $0x54] sm:$0xf]
        %v168 = vld [vmem:[%s142 + $0x58] sm:$0xf]
        %v169 = vld [vmem:[%s142 + $0x5c] sm:$0xf]
        %v170 = vld [vmem:[%s142 + $0x60] sm:$0xf]
        %v171 = vld [vmem:[%s142 + $0x64] sm:$0xf]
        %v172 = vld [vmem:[%s142 + $0x68] sm:$0xf]
        %v173 = vld [vmem:[%s142 + $0x6c] sm:$0xf]
        %v174 = vld [vmem:[%s142 + $0x70] sm:$0xf]
        %v175 = vld [vmem:[%s142 + $0x74] sm:$0xf]
        %v176 = vld [vmem:[%s142 + $0x78] sm:$0xf]
        %v177 = vld [vmem:[%s142 + $0x7c] sm:$0xf]
        %v178 = vld [vmem:[%s1] sm:$0xf]
        %v179 = vld [vmem:[%s1 + $0x4] sm:$0xf]
        %v180 = vld [vmem:[%s1 + $0x8] sm:$0xf]
        %v181 = vld [vmem:[%s1 + $0xc] sm:$0xf]
        %v182 = vld [vmem:[%s1 + $0x10] sm:$0xf]
        %v183 = vld [vmem:[%s1 + $0x14] sm:$0xf]
        %v184 = vld [vmem:[%s1 + $0x18] sm:$0xf]
        %v185 = vld [vmem:[%s1 + $0x1c] sm:$0xf]
        %v218 = vunpack.c.l.b16 %v146
        %v219 = vunpack.c.l.b16 %v147
        %v220 = vunpack.c.l.b16 %v148
        %v221 = vunpack.c.l.b16 %v149
        %v222 = vunpack.c.l.b16 %v150
        %v223 = vunpack.c.l.b16 %v151
        %v224 = vunpack.c.l.b16 %v152
        %v225 = vunpack.c.l.b16 %v153
        %v226 = vunpack.c.l.b16 %v154
        %v227 = vunpack.c.l.b16 %v155
        %v228 = vunpack.c.l.b16 %v156
        %v229 = vunpack.c.l.b16 %v157
        %v230 = vunpack.c.l.b16 %v158
        %v231 = vunpack.c.l.b16 %v159
        %v232 = vunpack.c.l.b16 %v160
        %v233 = vunpack.c.l.b16 %v161
        %v234 = vunpack.c.l.b16 %v162
        %v235 = vunpack.c.l.b16 %v163
        %v236 = vunpack.c.l.b16 %v164
        %v237 = vunpack.c.l.b16 %v165
        %v238 = vunpack.c.l.b16 %v166
        %v239 = vunpack.c.l.b16 %v167
        %v240 = vunpack.c.l.b16 %v168
        %v241 = vunpack.c.l.b16 %v169
        %v242 = vunpack.c.l.b16 %v170
        %v243 = vunpack.c.l.b16 %v171
        %v244 = vunpack.c.l.b16 %v172
        %v245 = vunpack.c.l.b16 %v173
        %v246 = vunpack.c.l.b16 %v174
        %v247 = vunpack.c.l.b16 %v175
        %v248 = vunpack.c.l.b16 %v176
        %v249 = vunpack.c.l.b16 %v177
        %v250 = vpack.c.b16 %v219, %v218
        %v251 = vpack.c.b16 %v221, %v220
        %v252 = vpack.c.b16 %v223, %v222
        %v253 = vpack.c.b16 %v225, %v224
        %v254 = vpack.c.b16 %v227, %v226
        %v255 = vpack.c.b16 %v229, %v228
        %v256 = vpack.c.b16 %v231, %v230
        %v257 = vpack.c.b16 %v233, %v232
        %v258 = vpack.c.b16 %v235, %v234
        %v259 = vpack.c.b16 %v237, %v236
        %v260 = vpack.c.b16 %v239, %v238
        %v261 = vpack.c.b16 %v241, %v240
        %v262 = vpack.c.b16 %v243, %v242
        %v263 = vpack.c.b16 %v245, %v244
        %v264 = vpack.c.b16 %v247, %v246
        %v265 = vpack.c.b16 %v249, %v248
        %v274 = vunpack.c.l.b16 %v178
        %v275 = vunpack.c.l.b16 %v179
        %v276 = vunpack.c.l.b16 %v180
        %v277 = vunpack.c.l.b16 %v181
        %v278 = vunpack.c.l.b16 %v182
        %v279 = vunpack.c.l.b16 %v183
        %v280 = vunpack.c.l.b16 %v184
        %v281 = vunpack.c.l.b16 %v185
        %v282 = vpack.c.b16 %v275, %v274
        %v283 = vpack.c.b16 %v277, %v276
        %v284 = vpack.c.b16 %v279, %v278
        %v285 = vpack.c.b16 %v281, %v280
        %vm290 = vcmask 523264
        %v292 = vsel %vm290, %v250, 0
        %v295 = vsel %vm290, %v251, 0
        %v298 = vsel %vm290, %v252, 0
        %v301 = vsel %vm290, %v253, 0
        %v304 = vsel %vm290, %v254, 0
        %v307 = vsel %vm290, %v255, 0
        %v310 = vsel %vm290, %v256, 0
        %v313 = vsel %vm290, %v257, 0
        %v316 = vsel %vm290, %v258, 0
        %v319 = vsel %vm290, %v259, 0
        %v322 = vsel %vm290, %v260, 0
        %v325 = vsel %vm290, %v261, 0
        %v328 = vsel %vm290, %v262, 0
        %v331 = vsel %vm290, %v263, 0
        %v334 = vsel %vm290, %v264, 0
        %v337 = vsel %vm290, %v265, 0
        %339 = vmatpush.bf16.msra.mxu0 0
        %340 = vmatpush.bf16.msra.mxu0 0
        %341 = vmatpush.bf16.msra.mxu0 0
        %342 = vmatpush.bf16.msra.mxu0 0
        %343 = vmatpush.bf16.msra.mxu0 %v285
        %344 = vmatpush.bf16.msra.mxu0 %v284
        %345 = vmatpush.bf16.msra.mxu0 %v283
        %346 = vmatpush.bf16.msra.mxu0 %v282
        %347 = vmatmul.bf16.gmra.mxu0 %v292
        %v348 = vpop.f32.mrf.mxu0
        %v349 = vadd.f32 0.0, %v348
        %v350 = vpop.f32.mrf.mxu0
        %v351 = vadd.f32 0.0, %v350
        %352 = vmatmul.bf16.gmra.mxu0 %v295
        %v353 = vpop.f32.mrf.mxu0
        %v354 = vadd.f32 0.0, %v353
        %v355 = vpop.f32.mrf.mxu0
        %v356 = vadd.f32 0.0, %v355
        %357 = vmatmul.bf16.gmra.mxu0 %v298
        %v358 = vpop.f32.mrf.mxu0
        %v359 = vadd.f32 0.0, %v358
        %v360 = vpop.f32.mrf.mxu0
        %v361 = vadd.f32 0.0, %v360
        %362 = vmatmul.bf16.gmra.mxu0 %v301
        %v363 = vpop.f32.mrf.mxu0
        %v364 = vadd.f32 0.0, %v363
        %v365 = vpop.f32.mrf.mxu0
        %v366 = vadd.f32 0.0, %v365
        %367 = vmatmul.bf16.gmra.mxu0 %v304
        %v368 = vpop.f32.mrf.mxu0
        %v369 = vadd.f32 0.0, %v368
        %v370 = vpop.f32.mrf.mxu0
        %v371 = vadd.f32 0.0, %v370
        %372 = vmatmul.bf16.gmra.mxu0 %v307
        %v373 = vpop.f32.mrf.mxu0
        %v374 = vadd.f32 0.0, %v373
        %v375 = vpop.f32.mrf.mxu0
        %v376 = vadd.f32 0.0, %v375
        %377 = vmatmul.bf16.gmra.mxu0 %v310
        %v378 = vpop.f32.mrf.mxu0
        %v379 = vadd.f32 0.0, %v378
        %v380 = vpop.f32.mrf.mxu0
        %v381 = vadd.f32 0.0, %v380
        %382 = vmatmul.bf16.gmra.mxu0 %v313
        %v383 = vpop.f32.mrf.mxu0
        %v384 = vadd.f32 0.0, %v383
        %v385 = vpop.f32.mrf.mxu0
        %v386 = vadd.f32 0.0, %v385
        %387 = vmatmul.bf16.gmra.mxu0 %v316
        %v388 = vpop.f32.mrf.mxu0
        %v389 = vadd.f32 0.0, %v388
        %v390 = vpop.f32.mrf.mxu0
        %v391 = vadd.f32 0.0, %v390
        %392 = vmatmul.bf16.gmra.mxu0 %v319
        %v393 = vpop.f32.mrf.mxu0
        %v394 = vadd.f32 0.0, %v393
        %v395 = vpop.f32.mrf.mxu0
        %v396 = vadd.f32 0.0, %v395
        %397 = vmatmul.bf16.gmra.mxu0 %v322
        %v398 = vpop.f32.mrf.mxu0
        %v399 = vadd.f32 0.0, %v398
        %v400 = vpop.f32.mrf.mxu0
        %v401 = vadd.f32 0.0, %v400
        %402 = vmatmul.bf16.gmra.mxu0 %v325
        %v403 = vpop.f32.mrf.mxu0
        %v404 = vadd.f32 0.0, %v403
        %v405 = vpop.f32.mrf.mxu0
        %v406 = vadd.f32 0.0, %v405
        %407 = vmatmul.bf16.gmra.mxu0 %v328
        %v408 = vpop.f32.mrf.mxu0
        %v409 = vadd.f32 0.0, %v408
        %v410 = vpop.f32.mrf.mxu0
        %v411 = vadd.f32 0.0, %v410
        %412 = vmatmul.bf16.gmra.mxu0 %v331
        %v413 = vpop.f32.mrf.mxu0
        %v414 = vadd.f32 0.0, %v413
        %v415 = vpop.f32.mrf.mxu0
        %v416 = vadd.f32 0.0, %v415
        %417 = vmatmul.bf16.gmra.mxu0 %v334
        %v418 = vpop.f32.mrf.mxu0
        %v419 = vadd.f32 0.0, %v418
        %v420 = vpop.f32.mrf.mxu0
        %v421 = vadd.f32 0.0, %v420
        %422 = vmatmul.bf16.gmra.mxu0 %v337
        %v423 = vpop.f32.mrf.mxu0
        %v424 = vadd.f32 0.0, %v423
        %v425 = vpop.f32.mrf.mxu0
        %v426 = vadd.f32 0.0, %v425
        %427 = vdwg.mxu0
        %428 = vst [vmem:[%s137] sm:$0xff] %v349
        %429 = vst [vmem:[%s137 + $0x8] sm:$0xff] %v351
        %430 = vst [vmem:[%s137 + $0x10] sm:$0xff] %v354
        %431 = vst [vmem:[%s137 + $0x18] sm:$0xff] %v356
        %432 = vst [vmem:[%s137 + $0x20] sm:$0xff] %v359
        %433 = vst [vmem:[%s137 + $0x28] sm:$0xff] %v361
        %434 = vst [vmem:[%s137 + $0x30] sm:$0xff] %v364
        %435 = vst [vmem:[%s137 + $0x38] sm:$0xff] %v366
        %436 = vst [vmem:[%s137 + $0x40] sm:$0xff] %v369
        %437 = vst [vmem:[%s137 + $0x48] sm:$0xff] %v371
        %438 = vst [vmem:[%s137 + $0x50] sm:$0xff] %v374
        %439 = vst [vmem:[%s137 + $0x58] sm:$0xff] %v376
        %440 = vst [vmem:[%s137 + $0x60] sm:$0xff] %v379
        %441 = vst [vmem:[%s137 + $0x68] sm:$0xff] %v381
        %442 = vst [vmem:[%s137 + $0x70] sm:$0xff] %v384
        %443 = vst [vmem:[%s137 + $0x78] sm:$0xff] %v386
        %444 = vst [vmem:[%s137 + $0x80] sm:$0xff] %v389
        %445 = vst [vmem:[%s137 + $0x88] sm:$0xff] %v391
        %446 = vst [vmem:[%s137 + $0x90] sm:$0xff] %v394
        %447 = vst [vmem:[%s137 + $0x98] sm:$0xff] %v396
        %448 = vst [vmem:[%s137 + $0xa0] sm:$0xff] %v399
        %449 = vst [vmem:[%s137 + $0xa8] sm:$0xff] %v401
        %450 = vst [vmem:[%s137 + $0xb0] sm:$0xff] %v404
        %451 = vst [vmem:[%s137 + $0xb8] sm:$0xff] %v406
        %452 = vst [vmem:[%s137 + $0xc0] sm:$0xff] %v409
        %453 = vst [vmem:[%s137 + $0xc8] sm:$0xff] %v411
        %454 = vst [vmem:[%s137 + $0xd0] sm:$0xff] %v414
        %455 = vst [vmem:[%s137 + $0xd8] sm:$0xff] %v416
        %456 = vst [vmem:[%s137 + $0xe0] sm:$0xff] %v419
        %457 = vst [vmem:[%s137 + $0xe8] sm:$0xff] %v421
        %458 = vst [vmem:[%s137 + $0xf0] sm:$0xff] %v424
        %459 = vst [vmem:[%s137 + $0xf8] sm:$0xff] %v426
        %s460 = sand.u32 %s71, 1
        %s461 = scalar_lea.sflag [#allocation3], %s460
        %s462 = sand.u32 %s71, 1
        %s463 = smul.addr %s462, 256
        %s464 = scalar_lea.vmem [#allocation2], %s463
        // Predicated region
        $region29: #{tpu_custom_call.1} parent=27 // pred_check
          %p465 = pneg %p81
        $region30: #{tpu_custom_call.1} parent=27 // pred_check_branch
          %467 = sbr.rel (%p465) target = $region32
        $region31: #{tpu_custom_call.1} parent=27 // pred_region
          %s468 = smul.u32 32, %s16
          %470 = vsyncadd %s461, 0
          %s471 = smul.addr %s468, 8
          %s472 = scalar_lea.hbm %s2, %s471
          %s473 = sshll.u32 %s464, 4
          %s474 = int_to_ptr.vmem [resolvable:$true] %s473
          %s475 = sshll.u32 %s472, 4
          %s476 = int_to_ptr.hbm [resolvable:$true] %s475
          %481 = dma.vmem_to_hbm [thread:$0]  %s474, 4096, %s476, %s461, 128, 128, 8
        $region32: #{tpu_custom_call.1} parent=27 // pred_fallthru
          _
      $region28: #{tpu_custom_call.1} parent=5 // pred_fallthru
        _
      %p482 = scmp.le.s32.totalorder 2, %s11
      // Predicated region
      $region33: #{tpu_custom_call.1} parent=5 // pred_check
        %p483 = pneg %p482
      $region34: #{tpu_custom_call.1} parent=5 // pred_check_branch
        %485 = sbr.rel (%p483) target = $region36
      $region35: #{tpu_custom_call.1} parent=5 // pred_region
        %s486 = ssub.s32 %s11, 2
        // Predicated region
        $region37: #{tpu_custom_call.1} parent=35 // pred_check
          %p487 = pneg %p87
        $region38: #{tpu_custom_call.1} parent=35 // pred_check_branch
          %489 = sbr.rel (%p487) target = $region40
        $region39: #{tpu_custom_call.1} parent=35 // pred_region
          %s490 = sand.u32 %s72, 1
          %s491 = scalar_lea.sflag [#allocation3], %s490
          %s492 = sand.u32 %s72, 1
          %s493 = smul.addr %s492, 256
          %s494 = scalar_lea.vmem [#allocation2], %s493
          %496 = dma.done %s491, 4096
        $region40: #{tpu_custom_call.1} parent=35 // pred_fallthru
          _
      $region36: #{tpu_custom_call.1} parent=5 // pred_fallthru
        _
    $region6: #{tpu_custom_call.1} parent=1 // loop_footer
      %s15 = sadd.s32 1, %s11
    $region7: #{tpu_custom_call.1} parent=1 // loop_footer_branch
      %10 = sbr.rel target = $region3
    $region8: #{tpu_custom_call.1} parent=1 // loop_exit
      _
    %497 = vsyncpa [#allocation3], 1
    %s498 = scalar_lea.sflag [#allocation3], 1
    %499 = vsyncpa %s498, 1

</llo_original>
